<compile_context>
chip_gen: v7x
topology: tpu7x:2x2x1
jax: 0.10.0
libtpu: 0.0.40
codegen_flags: <defaults>
</compile_context>

<pallas_src>
import functools

import jax
import jax.numpy as jnp
from jax import lax
from jax.experimental import pallas as pl
from jax.experimental.pallas import tpu as pltpu


# ---------------------------------------------------------------------------
# Kernels
# ---------------------------------------------------------------------------
def _embed_affine(label_ref, x_ref, table_ref):
    """Shared math: one-hot embedding lookup via a single fused MXU matmul."""
    x = x_ref[0]                                            # (C, TW) f32
    C = x.shape[0]
    TW = x.shape[-1]
    L = table_ref.shape[-1]
    labels = label_ref[0]                                   # (1, TW) int32
    lbl_iota = lax.broadcasted_iota(jnp.int32, (L, TW), 0)  # (L, TW)
    onehot = (lbl_iota == labels).astype(jnp.float32)       # (L, TW)
    # (2C, L) @ (L, TW) -> (2C, TW): weight rows [0:C], bias rows [C:2C]
    wb = jnp.dot(table_ref[...], onehot, preferred_element_type=jnp.float32)
    return x, wb[:C, :], wb[C:, :]


def class_affine_kernel(label_ref, x_ref, table_ref, out_ref):
    x, cw, cb = _embed_affine(label_ref, x_ref, table_ref)
    out_ref[0] = x * cw + cb


def class_affine_dist_kernel(label_ref, x_ref, dist_ref, table_ref, dconv_ref, out_ref):
    x, cw, cb = _embed_affine(label_ref, x_ref, table_ref)
    d0 = dist_ref[0, 0:1, :]                                # (1, TW)
    d1 = dist_ref[0, 1:2, :]                                # (1, TW)
    # 1x1 conv(2 -> 1): scalar weights/biases read from SMEM.
    mod_w = dconv_ref[0] * d0 + dconv_ref[1] * d1 + dconv_ref[2]
    mod_b = dconv_ref[3] * d0 + dconv_ref[4] * d1 + dconv_ref[5]
    cw = cw * (1.0 + mod_w)                                 # broadcast over C sublanes
    cb = cb * (1.0 + mod_b)
    out_ref[0] = x * cw + cb


# ---------------------------------------------------------------------------
# Wrapper
# ---------------------------------------------------------------------------
def _nearest_resize(img, H, W):
    """F.interpolate(img, size=(H, W), mode='nearest') -- pure gather glue."""
    Hs, Ws = img.shape[2], img.shape[3]
    hi = (jnp.arange(H) * Hs) // H
    wi = (jnp.arange(W) * Ws) // W
    return img[:, :, hi, :][:, :, :, wi]


@functools.partial(jax.jit, static_argnames=("add_dist", "max_tile"))
def class_affine(x, mask, params, input_dist=None, *, add_dist=False, max_tile=2048):
    """x: (B, C, H, W) f32; mask: (B, L, H, W); input_dist: (B, 2, Hd, Wd) if add_dist."""
    B, C, H, W = x.shape
    L = mask.shape[1]
    HW = H * W

    # argmax over label channels in the wrapper (first occurrence == torch.argmax tie-break)
    labels = jnp.argmax(mask, axis=1).astype(jnp.int32).reshape(B, 1, HW)
    x_f = x.astype(jnp.float32).reshape(B, C, HW)

    # fused embedding table [W^T ; b^T] -> (2C, L)
    table = jnp.concatenate(
        [params["weight"].T, params["bias"].T], axis=0).astype(jnp.float32)

    if add_dist:
        dist = _nearest_resize(input_dist.astype(jnp.float32), H, W).reshape(B, 2, HW)
        dconv = jnp.concatenate([
            params["dist_conv_w_w"].reshape(-1), params["dist_conv_w_b"].reshape(-1),
            params["dist_conv_b_w"].reshape(-1), params["dist_conv_b_b"].reshape(-1),
        ]).astype(jnp.float32)                               # (6,) -> SMEM

    # --- HW tiling (TW multiple of 128 unless it covers the whole padded axis) ---
    if HW <= max_tile:
        TW, HW_pad = HW, HW
    else:
        assert max_tile % 128 == 0, "max_tile must be a multiple of 128"
        TW = max_tile
        HW_pad = ((HW + TW - 1) // TW) * TW

    def pad_hw(a):
        return a if HW_pad == HW else jnp.pad(a, ((0, 0), (0, 0), (0, HW_pad - HW)))

    labels_p, x_p = pad_hw(labels), pad_hw(x_f)

    def tile_spec(c):
        return pl.BlockSpec((1, c, TW), lambda b, t: (b, 0, t))

    in_specs = [tile_spec(1), tile_spec(C)]
    args = [labels_p, x_p]
    if add_dist:
        in_specs.append(tile_spec(2))
        args.append(pad_hw(dist))
    in_specs.append(pl.BlockSpec((2 * C, L), lambda b, t: (0, 0)))   # shared table
    args.append(table)
    if add_dist:
        in_specs.append(pl.BlockSpec(memory_space=pltpu.MemorySpace.SMEM))
        args.append(dconv)

    kernel = class_affine_dist_kernel if add_dist else class_affine_kernel

    out = pl.pallas_call(
        kernel,
        out_shape=jax.ShapeDtypeStruct((B, C, HW_pad), jnp.float32),
        grid=(B, HW_pad // TW),
        in_specs=in_specs,
        out_specs=tile_spec(C),
        compiler_params=pltpu.CompilerParams(
            dimension_semantics=("parallel", "parallel")),
    )(*args)

    return out[:, :, :HW].reshape(B, C, H, W)


# ---------------------------------------------------------------------------
# Params + pure-JAX reference (for verification)
# ---------------------------------------------------------------------------
def init_params(key, label_nc, norm_nc):
    ks = jax.random.split(key, 5)
    return {
        "weight": jax.random.uniform(ks[0], (label_nc, norm_nc), jnp.float32),  # nn.init.uniform_
        "bias": jnp.zeros((label_nc, norm_nc), jnp.float32),                    # nn.init.zeros_
        # Module inits the dist convs to zero (branch would be a numerical no-op);
        # use small non-zero values here so the add_dist path is actually exercised.
        "dist_conv_w_w": 0.1 * jax.random.normal(ks[1], (2,), jnp.float32),
        "dist_conv_w_b": 0.1 * jax.random.normal(ks[2], (1,), jnp.float32),
        "dist_conv_b_w": 0.1 * jax.random.normal(ks[3], (2,), jnp.float32),
        "dist_conv_b_b": 0.1 * jax.random.normal(ks[4], (1,), jnp.float32),
    }


def class_affine_ref(x, mask, params, input_dist=None, *, add_dist=False):
    B, C, H, W = x.shape
    labels = jnp.argmax(mask, axis=1)                                  # (B, H, W)
    cw = params["weight"][labels].transpose(0, 3, 1, 2)                # (B, C, H, W)
    cb = params["bias"][labels].transpose(0, 3, 1, 2)
    if add_dist:
        d = _nearest_resize(input_dist, H, W)                          # (B, 2, H, W)
        mw = jnp.tensordot(params["dist_conv_w_w"], d, axes=([0], [1]))[:, None] \
            + params["dist_conv_w_b"][0]
        mb = jnp.tensordot(params["dist_conv_b_w"], d, axes=([0], [1]))[:, None] \
            + params["dist_conv_b_b"][0]
        cw = cw * (1.0 + mw)
        cb = cb * (1.0 + mb)
    return x * cw + cb


# ---------------------------------------------------------------------------
if __name__ == "__main__":
    key = jax.random.PRNGKey(0)
    B, C, H, W, L = 2, 8, 32, 32, 6            # batch, norm_nc, spatial, label_nc_
    kx, km, kd, kp = jax.random.split(key, 4)

    x = jax.random.normal(kx, (B, C, H, W), jnp.float32)
    mask = jax.random.uniform(km, (B, L, H, W), jnp.float32)           # soft label scores
    input_dist = jax.random.uniform(kd, (B, 2, 16, 16), jnp.float32)   # coarse -> nearest upsample
    params = init_params(kp, L, C)

    # add_dist=True, small max_tile so the HW-tiling path (grid=(B, 2)) is exercised
    out = class_affine(x, mask, params, input_dist, add_dist=True, max_tile=512)
    out = jax.block_until_ready(out)
    ref = class_affine_ref(x, mask, params, input_dist, add_dist=True)
    assert out.shape == (B, C, H, W), out.shape
    assert jnp.all(jnp.isfinite(out))
    assert jnp.allclose(out, ref, atol=1e-5, rtol=1e-5), float(jnp.max(jnp.abs(out - ref)))

    # add_dist=False path (single whole-HW tile per batch element)
    out2 = class_affine(x, mask, params, add_dist=False)
    out2 = jax.block_until_ready(out2)
    ref2 = class_affine_ref(x, mask, params, add_dist=False)
    assert jnp.allclose(out2, ref2, atol=1e-5, rtol=1e-5), float(jnp.max(jnp.abs(out2 - ref2)))

    print("KERNEL_OK")
</pallas_src>

<mosaic_0001>
module attributes {stable_mosaic.version = 11 : i64} {
  func.func @class_affine_dist_kernel(%arg0: i32, %arg1: i32, %arg2: memref<1x1x512xi32, #tpu.memory_space<vmem>>, %arg3: memref<1x8x512xf32, #tpu.memory_space<vmem>>, %arg4: memref<1x2x512xf32, #tpu.memory_space<vmem>>, %arg5: memref<16x6xf32, #tpu.memory_space<vmem>>, %arg6: memref<6xf32, #tpu.memory_space<smem>>, %arg7: memref<1x8x512xf32, #tpu.memory_space<vmem>>) attributes {dimension_semantics = [#tpu.dimension_semantics<parallel>, #tpu.dimension_semantics<parallel>], iteration_bounds = array<i64: 2, 2>, scalar_prefetch = 0 : i64, scratch_operands = 0 : i64, tpu.core_type = #tpu.core_type<tc>, window_params = [{transform_indices = @transform_0, window_bounds = array<i64: 1, 1, 512>}, {transform_indices = @transform_1, window_bounds = array<i64: 1, 8, 512>}, {transform_indices = @transform_2, window_bounds = array<i64: 1, 2, 512>}, {pipeline_mode = #tpu.pipeline_mode<synchronous>, transform_indices = @transform_3, window_bounds = array<i64: 16, 6>}, {transform_indices = @transform_4, window_bounds = array<i64: 6>}, {transform_indices = @transform_5, window_bounds = array<i64: 1, 8, 512>}]} {
    %c0 = arith.constant 0 : index
    %c0_0 = arith.constant 0 : index
    %c0_1 = arith.constant 0 : index
    %0 = vector.load %arg3[%c0, %c0_0, %c0_1] : memref<1x8x512xf32, #tpu.memory_space<vmem>>, vector<1x8x512xf32>
    %1 = vector.shape_cast %0 : vector<1x8x512xf32> to vector<8x512xf32>
    %c0_2 = arith.constant 0 : index
    %c0_3 = arith.constant 0 : index
    %c0_4 = arith.constant 0 : index
    %2 = vector.load %arg2[%c0_2, %c0_3, %c0_4] : memref<1x1x512xi32, #tpu.memory_space<vmem>>, vector<1x1x512xi32>
    %3 = vector.shape_cast %2 : vector<1x1x512xi32> to vector<1x512xi32>
    %4 = tpu.iota {dimensions = array<i32: 0>} : vector<6x512xi32>
    %5 = vector.broadcast %3 : vector<1x512xi32> to vector<6x512xi32>
    %6 = arith.cmpi eq, %4, %5 : vector<6x512xi32>
    %7 = arith.extui %6 : vector<6x512xi1> to vector<6x512xi32>
    %8 = arith.sitofp %7 : vector<6x512xi32> to vector<6x512xf32>
    %c0_5 = arith.constant 0 : index
    %c0_6 = arith.constant 0 : index
    %9 = vector.load %arg5[%c0_5, %c0_6] : memref<16x6xf32, #tpu.memory_space<vmem>>, vector<16x6xf32>
    %cst = arith.constant dense<0.000000e+00> : vector<16x512xf32>
    %10 = tpu.matmul %9, %8, %cst {dimension_numbers = #tpu.dot_dimension_numbers<[1], [0], [0], [1], [0, 0, 1, 1], [], []>} : vector<16x6xf32>, vector<6x512xf32>, vector<16x512xf32> -> vector<16x512xf32>
    %11 = vector.extract_strided_slice %10 {offsets = [0, 0], sizes = [8, 512], strides = [1, 1]} : vector<16x512xf32> to vector<8x512xf32>
    %12 = vector.extract_strided_slice %10 {offsets = [8, 0], sizes = [8, 512], strides = [1, 1]} : vector<16x512xf32> to vector<8x512xf32>
    %c0_7 = arith.constant 0 : index
    %c0_8 = arith.constant 0 : index
    %c0_9 = arith.constant 0 : index
    %13 = vector.load %arg4[%c0_7, %c0_8, %c0_9] : memref<1x2x512xf32, #tpu.memory_space<vmem>>, vector<1x1x512xf32>
    %14 = vector.shape_cast %13 : vector<1x1x512xf32> to vector<1x512xf32>
    %c0_10 = arith.constant 0 : index
    %c1 = arith.constant 1 : index
    %c0_11 = arith.constant 0 : index
    %15 = vector.load %arg4[%c0_10, %c1, %c0_11] : memref<1x2x512xf32, #tpu.memory_space<vmem>>, vector<1x1x512xf32>
    %16 = vector.shape_cast %15 : vector<1x1x512xf32> to vector<1x512xf32>
    %c0_12 = arith.constant 0 : index
    %17 = memref.load %arg6[%c0_12] : memref<6xf32, #tpu.memory_space<smem>>
    %18 = vector.broadcast %17 : f32 to vector<1x512xf32>
    %19 = arith.mulf %18, %14 : vector<1x512xf32>
    %c1_13 = arith.constant 1 : index
    %20 = memref.load %arg6[%c1_13] : memref<6xf32, #tpu.memory_space<smem>>
    %21 = vector.broadcast %20 : f32 to vector<1x512xf32>
    %22 = arith.mulf %21, %16 : vector<1x512xf32>
    %23 = arith.addf %19, %22 : vector<1x512xf32>
    %c2 = arith.constant 2 : index
    %24 = memref.load %arg6[%c2] : memref<6xf32, #tpu.memory_space<smem>>
    %25 = vector.broadcast %24 : f32 to vector<1x512xf32>
    %26 = arith.addf %23, %25 : vector<1x512xf32>
    %c3 = arith.constant 3 : index
    %27 = memref.load %arg6[%c3] : memref<6xf32, #tpu.memory_space<smem>>
    %28 = vector.broadcast %27 : f32 to vector<1x512xf32>
    %29 = arith.mulf %28, %14 : vector<1x512xf32>
    %c4 = arith.constant 4 : index
    %30 = memref.load %arg6[%c4] : memref<6xf32, #tpu.memory_space<smem>>
    %31 = vector.broadcast %30 : f32 to vector<1x512xf32>
    %32 = arith.mulf %31, %16 : vector<1x512xf32>
    %33 = arith.addf %29, %32 : vector<1x512xf32>
    %c5 = arith.constant 5 : index
    %34 = memref.load %arg6[%c5] : memref<6xf32, #tpu.memory_space<smem>>
    %35 = vector.broadcast %34 : f32 to vector<1x512xf32>
    %36 = arith.addf %33, %35 : vector<1x512xf32>
    %cst_14 = arith.constant 1.000000e+00 : f32
    %37 = vector.broadcast %cst_14 : f32 to vector<1x512xf32>
    %38 = arith.addf %37, %26 : vector<1x512xf32>
    %39 = vector.broadcast %38 : vector<1x512xf32> to vector<8x512xf32>
    %40 = arith.mulf %11, %39 : vector<8x512xf32>
    %cst_15 = arith.constant 1.000000e+00 : f32
    %41 = vector.broadcast %cst_15 : f32 to vector<1x512xf32>
    %42 = arith.addf %41, %36 : vector<1x512xf32>
    %43 = vector.broadcast %42 : vector<1x512xf32> to vector<8x512xf32>
    %44 = arith.mulf %12, %43 : vector<8x512xf32>
    %45 = arith.mulf %1, %40 : vector<8x512xf32>
    %46 = arith.addf %45, %44 : vector<8x512xf32>
    %c0_16 = arith.constant 0 : index
    %c0_17 = arith.constant 0 : index
    %c0_18 = arith.constant 0 : index
    %47 = vector.load %arg7[%c0_16, %c0_17, %c0_18] : memref<1x8x512xf32, #tpu.memory_space<vmem>>, vector<1x8x512xf32>
    %48 = vector.shape_cast %47 : vector<1x8x512xf32> to vector<8x512xf32>
    %49 = vector.shape_cast %46 : vector<8x512xf32> to vector<1x8x512xf32>
    tpu.vector_store %arg7[%c0_16, %c0_17, %c0_18], %49 {strides = array<i32>} : memref<1x8x512xf32, #tpu.memory_space<vmem>>, vector<1x8x512xf32>,
    return
  }
  func.func @transform_0(%arg0: i32, %arg1: i32) -> (i32, i32, i32) {
    %c0_i32 = arith.constant 0 : i32
    %c0_i32_0 = arith.constant 0 : i32
    return %arg0, %c0_i32, %arg1 : i32, i32, i32
  }
  func.func @transform_1(%arg0: i32, %arg1: i32) -> (i32, i32, i32) {
    %c0_i32 = arith.constant 0 : i32
    %c0_i32_0 = arith.constant 0 : i32
    return %arg0, %c0_i32, %arg1 : i32, i32, i32
  }
  func.func @transform_2(%arg0: i32, %arg1: i32) -> (i32, i32, i32) {
    %c0_i32 = arith.constant 0 : i32
    %c0_i32_0 = arith.constant 0 : i32
    return %arg0, %c0_i32, %arg1 : i32, i32, i32
  }
  func.func @transform_3(%arg0: i32, %arg1: i32) -> (i32, i32) {
    %c0_i32 = arith.constant 0 : i32
    %c0_i32_0 = arith.constant 0 : i32
    %c0_i32_1 = arith.constant 0 : i32
    return %c0_i32, %c0_i32_0 : i32, i32
  }
  func.func @transform_4(%arg0: i32, %arg1: i32) -> i32 {
    %c0_i32 = arith.constant 0 : i32
    %c0_i32_0 = arith.constant 0 : i32
    return %c0_i32 : i32
  }
  func.func @transform_5(%arg0: i32, %arg1: i32) -> (i32, i32, i32) {
    %c0_i32 = arith.constant 0 : i32
    %c0_i32_0 = arith.constant 0 : i32
    return %arg0, %c0_i32, %arg1 : i32, i32, i32
  }
}

</mosaic_0001>

<llo_original>
// kernel: class_affine.1
$region0: #{class_affine.1}
  #allocation0 [shape = 'u32[]', space=smem, size = 0x4, offset = 0x4, fixed_abs, tag = 'smem constant byte address 0x4 - core index']
  #allocation1 [shape = 'u32[144,128]{1,0:T(1,128)}', space=vmem, size = 0x12000, scoped, tag = 'internal scratch']
  %s0 = inlined_call_operand.vmem [shape: s32[2,1,1024], index: 0, kind: input, shape index: {}]
  %s1 = inlined_call_operand.vmem [shape: f32[2,8,1024], index: 1, kind: input, shape index: {}]
  %s2 = inlined_call_operand.vmem [shape: f32[2,2,1024], index: 2, kind: input, shape index: {}]
  %s3 = inlined_call_operand.vmem [shape: f32[16,6], index: 3, kind: input, shape index: {}]
  %s4 = inlined_call_operand.vmem [shape: f32[6], index: 4, kind: input, shape index: {}]
  %s5 = inlined_call_operand.vmem [shape: f32[2,8,1024], index: 5, kind: output, shape index: {}]
  %s6 = sld [smem:[#allocation0]]
  $region57: #{class_affine.1} parent=0
    _
  %s8 = ssub.s32 1, %s6
  %s9 = scalar_select 0, %s8, %s6
  $region1: #{class_affine.1} parent=0
    #allocation2 [shape = 'u8[512]{0}', space=smem, size = 0x200, scoped, tag = 'input window, operand 4, single buffered']
    #allocation3 [shape = 's32[2]{0}', space=sflag, size = 0x8, scoped, tag = 'scoped memory for class_affine.1']
    %10 = vsyncpa [#allocation3], 0
    loop: start=0, step=1, limit=6
    $region2: #{class_affine.1} parent=1 // loop_pre_header
      _
    $region3: #{class_affine.1} parent=1 // loop_header
      %s12 = sphi 0, %s16
      %p13 = scmp.ge.s32.totalorder %s12, 6
      %s19 = sphi 0, %s31
      %s20 = sphi 0, %s27
      %s21 = sphi 0, %s19
      %s22 = sphi 0, %s20
      %s23 = sphi 0, %s21
      %s24 = sphi 0, %s22
      %s36 = sphi 0, %s38
      %s39 = sphi 0, %s36
      %s40 = sphi 0, %s39
      %s56 = sphi 0, %s40
      %s64 = sphi 0, %s66
      %s67 = sphi 0, %s64
      %s68 = sphi 0, %s67
      %s84 = sphi 0, %s68
      %s92 = sphi 0, %s94
      %s95 = sphi 0, %s92
      %s96 = sphi 0, %s95
      %s112 = sphi 0, %s96
      %s116 = sphi 0, %s116
      %s118 = sphi 0, %s116
      %s119 = sphi 0, %s118
      %s133 = sphi 0, %s119
      %s137 = sphi 0, %s137
      %s139 = sphi 0, %s137
      %s140 = sphi 0, %s139
      %s154 = sphi 0, %s140
      %s162 = sphi 0, %s164
      %s165 = sphi 0, %s162
      %s166 = sphi 0, %s165
      %s182 = sphi 0, %s166
    $region4: #{class_affine.1} parent=1 // loop_header_branch
      %15 = sbr.rel (%p13) target = $region8
    $region5: #{class_affine.1} parent=1 // loop_body
      %s17 = ssub.s32 %s12, 1
      %s18 = ssub.s32 %s12, 2
      %s25 = sadd.s32 1, %s20
      %p26 = scmp.ge.s32.totalorder %s25, 2
      %s27 = scalar_select %p26, 0, %s25
      %s28 = sadd.s32 1, %s19
      %s29 = scalar_select %p26, %s28, %s19
      %p30 = scmp.ge.s32.totalorder %s29, 2
      %s31 = scalar_select %p30, 0, %s29
      %s32 = ssub.s32 %s19, %s31
      %s33 = ssub.s32 %s20, %s27
      %s34 = sor.u32 %s32, %s33
      %p35 = scmp.eq.s32.totalorder %s34, 0
      %s37 = sadd.s32 %s36, 1
      %s38 = scalar_select %p35, %s36, %s37
      %p41 = pneg %p35
      %p42 = scmp.eq.s32.totalorder %s12, 3
      %p43 = por %p41, %p42
      %p44 = scmp.ne.s32.totalorder %s36, %s39
      %p45 = scmp.eq.s32.totalorder %s12, 0
      %p46 = por %p44, %p45
      %p47 = scmp.ne.s32.totalorder %s36, %s39
      %p48 = scmp.eq.s32.totalorder %s17, 3
      %p49 = por %p47, %p48
      %p50 = scmp.ne.s32.totalorder %s39, %s40
      %p51 = scmp.eq.s32.totalorder %s17, 0
      %p52 = por %p50, %p51
      %p53 = scmp.ne.s32.totalorder %s39, %s40
      %p54 = scmp.eq.s32.totalorder %s18, 3
      %p55 = por %p53, %p54
      %p57 = scmp.ne.s32.totalorder %s40, %s56
      %p58 = scmp.eq.s32.totalorder %s18, 0
      %p59 = por %p57, %p58
      %s60 = ssub.s32 %s19, %s31
      %s61 = ssub.s32 %s20, %s27
      %s62 = sor.u32 %s60, %s61
      %p63 = scmp.eq.s32.totalorder %s62, 0
      %s65 = sadd.s32 %s64, 1
      %s66 = scalar_select %p63, %s64, %s65
      %p69 = pneg %p63
      %p70 = scmp.eq.s32.totalorder %s12, 3
      %p71 = por %p69, %p70
      %p72 = scmp.ne.s32.totalorder %s64, %s67
      %p73 = scmp.eq.s32.totalorder %s12, 0
      %p74 = por %p72, %p73
      %p75 = scmp.ne.s32.totalorder %s64, %s67
      %p76 = scmp.eq.s32.totalorder %s17, 3
      %p77 = por %p75, %p76
      %p78 = scmp.ne.s32.totalorder %s67, %s68
      %p79 = scmp.eq.s32.totalorder %s17, 0
      %p80 = por %p78, %p79
      %p81 = scmp.ne.s32.totalorder %s67, %s68
      %p82 = scmp.eq.s32.totalorder %s18, 3
      %p83 = por %p81, %p82
      %p85 = scmp.ne.s32.totalorder %s68, %s84
      %p86 = scmp.eq.s32.totalorder %s18, 0
      %p87 = por %p85, %p86
      %s88 = ssub.s32 %s19, %s31
      %s89 = ssub.s32 %s20, %s27
      %s90 = sor.u32 %s88, %s89
      %p91 = scmp.eq.s32.totalorder %s90, 0
      %s93 = sadd.s32 %s92, 1
      %s94 = scalar_select %p91, %s92, %s93
      %p97 = pneg %p91
      %p98 = scmp.eq.s32.totalorder %s12, 3
      %p99 = por %p97, %p98
      %p100 = scmp.ne.s32.totalorder %s92, %s95
      %p101 = scmp.eq.s32.totalorder %s12, 0
      %p102 = por %p100, %p101
      %p103 = scmp.ne.s32.totalorder %s92, %s95
      %p104 = scmp.eq.s32.totalorder %s17, 3
      %p105 = por %p103, %p104
      %p106 = scmp.ne.s32.totalorder %s95, %s96
      %p107 = scmp.eq.s32.totalorder %s17, 0
      %p108 = por %p106, %p107
      %p109 = scmp.ne.s32.totalorder %s95, %s96
      %p110 = scmp.eq.s32.totalorder %s18, 3
      %p111 = por %p109, %p110
      %p113 = scmp.ne.s32.totalorder %s96, %s112
      %p114 = scmp.eq.s32.totalorder %s18, 0
      %p115 = por %p113, %p114
      %s117 = sadd.s32 %s116, 1
      %p120 = scmp.eq.s32.totalorder %s12, 3
      %p121 = scmp.ne.s32.totalorder %s116, %s118
      %p122 = scmp.eq.s32.totalorder %s12, 0
      %p123 = por %p121, %p122
      %p124 = scmp.ne.s32.totalorder %s116, %s118
      %p125 = scmp.eq.s32.totalorder %s17, 3
      %p126 = por %p124, %p125
      %p127 = scmp.ne.s32.totalorder %s118, %s119
      %p128 = scmp.eq.s32.totalorder %s17, 0
      %p129 = por %p127, %p128
      %p130 = scmp.ne.s32.totalorder %s118, %s119
      %p131 = scmp.eq.s32.totalorder %s18, 3
      %p132 = por %p130, %p131
      %p134 = scmp.ne.s32.totalorder %s119, %s133
      %p135 = scmp.eq.s32.totalorder %s18, 0
      %p136 = por %p134, %p135
      %s138 = sadd.s32 %s137, 1
      %p141 = scmp.eq.s32.totalorder %s12, 3
      %p142 = scmp.ne.s32.totalorder %s137, %s139
      %p143 = scmp.eq.s32.totalorder %s12, 0
      %p144 = por %p142, %p143
      %p145 = scmp.ne.s32.totalorder %s137, %s139
      %p146 = scmp.eq.s32.totalorder %s17, 3
      %p147 = por %p145, %p146
      %p148 = scmp.ne.s32.totalorder %s139, %s140
      %p149 = scmp.eq.s32.totalorder %s17, 0
      %p150 = por %p148, %p149
      %p151 = scmp.ne.s32.totalorder %s139, %s140
      %p152 = scmp.eq.s32.totalorder %s18, 3
      %p153 = por %p151, %p152
      %p155 = scmp.ne.s32.totalorder %s140, %s154
      %p156 = scmp.eq.s32.totalorder %s18, 0
      %p157 = por %p155, %p156
      %s158 = ssub.s32 %s19, %s31
      %s159 = ssub.s32 %s20, %s27
      %s160 = sor.u32 %s158, %s159
      %p161 = scmp.eq.s32.totalorder %s160, 0
      %s163 = sadd.s32 %s162, 1
      %s164 = scalar_select %p161, %s162, %s163
      %p167 = pneg %p161
      %p168 = scmp.eq.s32.totalorder %s12, 3
      %p169 = por %p167, %p168
      %p170 = scmp.ne.s32.totalorder %s162, %s165
      %p171 = scmp.eq.s32.totalorder %s12, 0
      %p172 = por %p170, %p171
      %p173 = scmp.ne.s32.totalorder %s162, %s165
      %p174 = scmp.eq.s32.totalorder %s17, 3
      %p175 = por %p173, %p174
      %p176 = scmp.ne.s32.totalorder %s165, %s166
      %p177 = scmp.eq.s32.totalorder %s17, 0
      %p178 = por %p176, %p177
      %p179 = scmp.ne.s32.totalorder %s165, %s166
      %p180 = scmp.eq.s32.totalorder %s18, 3
      %p181 = por %p179, %p180
      %p183 = scmp.ne.s32.totalorder %s166, %s182
      %p184 = scmp.eq.s32.totalorder %s18, 0
      %p185 = por %p183, %p184
      %p186 = scmp.le.s32.totalorder 1, %s12
      %p187 = scmp.lt.s32.totalorder %s12, 5
      %p188 = pnand %p186, %p187
      %p189 = pneg %p188
      // Predicated region
      $region9: #{class_affine.1} parent=5 // pred_check
        _
      $region10: #{class_affine.1} parent=5 // pred_check_branch
        %191 = sbr.rel (%p188) target = $region12
      $region11: #{class_affine.1} parent=5 // pred_region
        %s192 = ssub.s32 %s12, 1
        // Predicated region
        $region13: #{class_affine.1} parent=11 // pred_check
          %p193 = pneg %p129
        $region14: #{class_affine.1} parent=11 // pred_check_branch
          %195 = sbr.rel (%p193) target = $region16
        $region15: #{class_affine.1} parent=11 // pred_region
          _
        $region16: #{class_affine.1} parent=11 // pred_fallthru
          _
        // Predicated region
        $region17: #{class_affine.1} parent=11 // pred_check
          %p196 = pneg %p150
        $region18: #{class_affine.1} parent=11 // pred_check_branch
          %198 = sbr.rel (%p196) target = $region20
        $region19: #{class_affine.1} parent=11 // pred_region
          %s200 = ssub.s32 16, 16
          %201 = vsyncadd [#allocation3], %s200
          %s203 = sshll.u32 %s4, 4
          %s204 = int_to_ptr.vmem [resolvable:$true] %s203
          %206 = dma.vmem_to_smem %s204, 16, [#allocation2], [#allocation3]
        $region20: #{class_affine.1} parent=11 // pred_fallthru
          _
      $region12: #{class_affine.1} parent=5 // pred_fallthru
        _
      %p207 = scmp.lt.s32.totalorder %s12, 4
      // Predicated region
      $region21: #{class_affine.1} parent=5 // pred_check
        %p208 = pneg %p207
      $region22: #{class_affine.1} parent=5 // pred_check_branch
        %210 = sbr.rel (%p208) target = $region24
      $region23: #{class_affine.1} parent=5 // pred_region
        // Predicated region
        $region25: #{class_affine.1} parent=23 // pred_check
          %p211 = pneg %p46
        $region26: #{class_affine.1} parent=23 // pred_check_branch
          %213 = sbr.rel (%p211) target = $region28
        $region27: #{class_affine.1} parent=23 // pred_region
          %s214 = smul.u32 4, %s20
          %p215 = scmp.lt.s32.totalorder %s19, 1
          %s216 = scalar_select %p215, %s19, 1
          %p217 = scmp.lt.s32.totalorder %s214, 7
          %s218 = scalar_select %p217, %s214, 7
          %s219 = smul.addr %s216, 8
          %s220 = sadd.s32 %s218, %s219
          %s221 = scalar_lea.vmem %s0, %s220
          %s222 = smul.u32 4, %s20
        $region28: #{class_affine.1} parent=23 // pred_fallthru
          _
        // Predicated region
        $region29: #{class_affine.1} parent=23 // pred_check
          %p223 = pneg %p74
        $region30: #{class_affine.1} parent=23 // pred_check_branch
          %225 = sbr.rel (%p223) target = $region32
        $region31: #{class_affine.1} parent=23 // pred_region
          %s226 = smul.u32 4, %s20
          %p227 = scmp.lt.s32.totalorder %s19, 1
          %s228 = scalar_select %p227, %s19, 1
          %p229 = scmp.lt.s32.totalorder %s226, 7
          %s230 = scalar_select %p229, %s226, 7
          %s231 = smul.addr %s228, 8
          %s232 = sadd.s32 %s230, %s231
          %s233 = smul.addr %s232, 8
          %s234 = scalar_lea.vmem %s1, %s233
          %s235 = smul.u32 4, %s20
        $region32: #{class_affine.1} parent=23 // pred_fallthru
          _
        // Predicated region
        $region33: #{class_affine.1} parent=23 // pred_check
          %p236 = pneg %p102
        $region34: #{class_affine.1} parent=23 // pred_check_branch
          %238 = sbr.rel (%p236) target = $region36
        $region35: #{class_affine.1} parent=23 // pred_region
          %s239 = smul.u32 4, %s20
          %p240 = scmp.lt.s32.totalorder %s19, 1
          %s241 = scalar_select %p240, %s19, 1
          %p242 = scmp.lt.s32.totalorder %s239, 7
          %s243 = scalar_select %p242, %s239, 7
          %s244 = smul.addr %s241, 8
          %s245 = sadd.s32 %s243, %s244
          %s246 = smul.addr %s245, 2
          %s247 = scalar_lea.vmem %s2, %s246
          %s248 = smul.u32 4, %s20
        $region36: #{class_affine.1} parent=23 // pred_fallthru
          _
      $region24: #{class_affine.1} parent=5 // pred_fallthru
        _
      %p249 = scmp.le.s32.totalorder 1, %s12
      %p250 = scmp.lt.s32.totalorder %s12, 5
      %p251 = pnand %p249, %p250
      %p252 = pneg %p251
      // Predicated region
      $region37: #{class_affine.1} parent=5 // pred_check
        _
      $region38: #{class_affine.1} parent=5 // pred_check_branch
        %254 = sbr.rel (%p251) target = $region40
      $region39: #{class_affine.1} parent=5 // pred_region
        %s255 = ssub.s32 %s12, 1
        // Predicated region
        $region41: #{class_affine.1} parent=39 // pred_check
          %p256 = pneg %p150
        $region42: #{class_affine.1} parent=39 // pred_check_branch
          %258 = sbr.rel (%p256) target = $region44
        $region43: #{class_affine.1} parent=39 // pred_region
          %259 = dma.done [#allocation3], 16
        $region44: #{class_affine.1} parent=39 // pred_fallthru
          _
        %260 = sfence
        %s261 = smul.u32 4, %s22
        %p262 = scmp.lt.s32.totalorder %s21, 1
        %s263 = scalar_select %p262, %s21, 1
        %p264 = scmp.lt.s32.totalorder %s261, 7
        %s265 = scalar_select %p264, %s261, 7
        %s266 = smul.addr %s263, 8
        %s267 = sadd.s32 %s265, %s266
        %s268 = scalar_lea.vmem %s0, %s267
        %p269 = pneg %p52
        %p270 = pneg %p49
        %s271 = smul.u32 4, %s22
        %p272 = scmp.lt.s32.totalorder %s21, 1
        %s273 = scalar_select %p272, %s21, 1
        %p274 = scmp.lt.s32.totalorder %s271, 7
        %s275 = scalar_select %p274, %s271, 7
        %s276 = smul.addr %s273, 8
        %s277 = sadd.s32 %s275, %s276
        %s278 = smul.addr %s277, 8
        %s279 = scalar_lea.vmem %s1, %s278
        %p280 = pneg %p80
        %p281 = pneg %p77
        %s282 = smul.u32 4, %s22
        %p283 = scmp.lt.s32.totalorder %s21, 1
        %s284 = scalar_select %p283, %s21, 1
        %p285 = scmp.lt.s32.totalorder %s282, 7
        %s286 = scalar_select %p285, %s282, 7
        %s287 = smul.addr %s284, 8
        %s288 = sadd.s32 %s286, %s287
        %s289 = smul.addr %s288, 2
        %s290 = scalar_lea.vmem %s2, %s289
        %p291 = pneg %p108
        %p292 = pneg %p105
        %p293 = pneg %p129
        %p294 = pneg %p126
        %p295 = pneg %p150
        %p296 = pneg %p147
        %p297 = pneg %p178
        %p298 = pneg %p175
        %s299 = smul.u32 4, %s22
        %p300 = scmp.lt.s32.totalorder %s21, 1
        %s301 = scalar_select %p300, %s21, 1
        %p302 = scmp.lt.s32.totalorder %s299, 7
        %s303 = scalar_select %p302, %s299, 7
        %s304 = smul.addr %s301, 8
        %s305 = sadd.s32 %s303, %s304
        %s306 = smul.addr %s305, 8
        %s307 = scalar_lea.vmem %s5, %s306
        %s308 = smul.u32 4, %s22
        %p309 = scmp.lt.s32.totalorder %s21, 1
        %s310 = scalar_select %p309, %s21, 1
        %p311 = scmp.lt.s32.totalorder %s308, 7
        %s312 = scalar_select %p311, %s308, 7
        %s313 = smul.addr %s310, 8
        %s314 = sadd.s32 %s312, %s313
        %s315 = scalar_lea.vmem %s0, %s314
        %s316 = smul.u32 4, %s22
        %s317 = smul.u32 4, %s22
        %p318 = scmp.lt.s32.totalorder %s21, 1
        %s319 = scalar_select %p318, %s21, 1
        %p320 = scmp.lt.s32.totalorder %s317, 7
        %s321 = scalar_select %p320, %s317, 7
        %s322 = smul.addr %s319, 8
        %s323 = sadd.s32 %s321, %s322
        %s324 = smul.addr %s323, 8
        %s325 = scalar_lea.vmem %s1, %s324
        %s326 = smul.u32 4, %s22
        %s327 = smul.u32 4, %s22
        %p328 = scmp.lt.s32.totalorder %s21, 1
        %s329 = scalar_select %p328, %s21, 1
        %p330 = scmp.lt.s32.totalorder %s327, 7
        %s331 = scalar_select %p330, %s327, 7
        %s332 = smul.addr %s329, 8
        %s333 = sadd.s32 %s331, %s332
        %s334 = smul.addr %s333, 2
        %s335 = scalar_lea.vmem %s2, %s334
        %s336 = smul.u32 4, %s22
        %s337 = smul.u32 4, %s22
        %p338 = scmp.lt.s32.totalorder %s21, 1
        %s339 = scalar_select %p338, %s21, 1
        %p340 = scmp.lt.s32.totalorder %s337, 7
        %s341 = scalar_select %p340, %s337, 7
        %s342 = smul.addr %s339, 8
        %s343 = sadd.s32 %s341, %s342
        %s344 = smul.addr %s343, 8
        %s345 = scalar_lea.vmem %s5, %s344
        %s346 = smul.u32 4, %s22
        %v347 = vld [vmem:[%s325] sm:$0xff]
        %v348 = vld [vmem:[%s325 + $0x8] sm:$0xff]
        %v349 = vld [vmem:[%s325 + $0x10] sm:$0xff]
        %v350 = vld [vmem:[%s325 + $0x18] sm:$0xff]
        %v351 = vld [vmem:[%s315] sm:$0xf]
        %v352 = vlaneseq
        %v353 = vshrl.u32 %v352, 7
        %v354 = vlaneseq
        %v355 = vshrl.u32 %v354, 7
        %v356 = vsub.s32 0, %v355
        %v357 = vrot.slane %v351, %v356
        %v358 = vlaneseq
        %v359 = vshrl.u32 %v358, 7
        %v360 = vsub.s32 1, %v359
        %v361 = vrot.slane %v351, %v360
        %v362 = vlaneseq
        %v363 = vshrl.u32 %v362, 7
        %v364 = vsub.s32 2, %v363
        %v365 = vrot.slane %v351, %v364
        %v366 = vlaneseq
        %v367 = vshrl.u32 %v366, 7
        %v368 = vsub.s32 3, %v367
        %v369 = vrot.slane %v351, %v368
        %vm370 = vcmp.eq.s32.totalorder %v353, %v357
        %vm371 = vcmp.eq.s32.totalorder %v353, %v361
        %vm372 = vcmp.eq.s32.totalorder %v353, %v365
        %vm373 = vcmp.eq.s32.totalorder %v353, %v369
        %v374 = vsel %vm370, 1, 0
        %v375 = vsel %vm371, 1, 0
        %v376 = vsel %vm372, 1, 0
        %v377 = vsel %vm373, 1, 0
        %v378 = vcvt.s32.f32 %v374
        %v379 = vcvt.s32.f32 %v375
        %v380 = vcvt.s32.f32 %v376
        %v381 = vcvt.s32.f32 %v377
        %v382 = vld [vmem:[%s3] sm:$0xff]
        %v383 = vld [vmem:[%s3 + $0x8] sm:$0xff]
        %vm384 = vcmask 48128
        %v386 = vsel %vm384, %v382, 0
        %v389 = vsel %vm384, %v383, 0
        %vm391 = vcmask 1045504
        %v393 = vsel %vm391, %v378, 0
        %v396 = vsel %vm391, %v379, 0
        %v399 = vsel %vm391, %v380, 0
        %v402 = vsel %vm391, %v381, 0
        %404 = vmatprep.subr.mxu0 %v396
        %405 = vmatpush1.msra.mxu0 %v393
        %406 = vmatprep.subr.mxu0 0.0
        %407 = vmatpush1.msra.mxu0 0.0
        %408 = vmatprep.subr.mxu0 0.0
        %409 = vmatpush1.msra.mxu0 0.0
        %410 = vmatprep.subr.mxu0 0.0
        %411 = vmatpush1.msra.mxu0 0.0
        %412 = vmatprep.subr.mxu0 0.0
        %413 = vmatpush1.msra.mxu0 0.0
        %414 = vmatprep.subr.mxu0 0.0
        %415 = vmatpush1.msra.mxu0 0.0
        %416 = vmatprep.subr.mxu0 0.0
        %417 = vmatpush1.msra.mxu0 0.0
        %418 = vmatprep.subr.mxu0 0.0
        %419 = vmatpush1.msra.mxu0 0.0
        %420 = vmatprep.subr.mxu0 0.0
        %421 = vmatpush1.msra.mxu0 0.0
        %422 = vmatprep.subr.mxu0 0.0
        %423 = vmatpush1.msra.mxu0 0.0
        %424 = vmatprep.subr.mxu0 0.0
        %425 = vmatpush1.msra.mxu0 0.0
        %426 = vmatprep.subr.mxu0 0.0
        %427 = vmatpush1.msra.mxu0 0.0
        %428 = vmatprep.subr.mxu0 0.0
        %429 = vmatpush1.msra.mxu0 0.0
        %430 = vmatprep.subr.mxu0 0.0
        %431 = vmatpush1.msra.mxu0 0.0
        %432 = vmatprep.subr.mxu0 0.0
        %433 = vmatpush1.msra.mxu0 0.0
        %434 = vmatprep.subr.mxu0 0.0
        %435 = vmatpush1.msra.mxu0 0.0
        %436 = vmatprep.subr.mxu0 0.0
        %437 = vmatpush1.msra.mxu0 0.0
        %438 = vmatprep.subr.mxu0 0.0
        %439 = vmatpush1.msra.mxu0 0.0
        %440 = vmatprep.subr.mxu0 0.0
        %441 = vmatpush1.msra.mxu0 0.0
        %442 = vmatprep.subr.mxu0 0.0
        %443 = vmatpush1.msra.mxu0 0.0
        %444 = vmatprep.subr.mxu0 0.0
        %445 = vmatpush1.msra.mxu0 0.0
        %446 = vmatprep.subr.mxu0 0.0
        %447 = vmatpush1.msra.mxu0 0.0
        %448 = vmatprep.subr.mxu0 0.0
        %449 = vmatpush1.msra.mxu0 0.0
        %450 = vmatprep.subr.mxu0 0.0
        %451 = vmatpush1.msra.mxu0 0.0
        %452 = vmatprep.subr.mxu0 0.0
        %453 = vmatpush1.msra.mxu0 0.0
        %454 = vmatprep.subr.mxu0 0.0
        %455 = vmatpush1.msra.mxu0 0.0
        %456 = vmatprep.subr.mxu0 0.0
        %457 = vmatpush1.msra.mxu0 0.0
        %458 = vmatprep.subr.mxu0 0.0
        %459 = vmatpush1.msra.mxu0 0.0
        %460 = vmatprep.subr.mxu0 0.0
        %461 = vmatpush1.msra.mxu0 0.0
        %462 = vmatprep.subr.mxu0 0.0
        %463 = vmatpush1.msra.mxu0 0.0
        %464 = vmatprep.subr.mxu0 0.0
        %465 = vmatpush1.msra.mxu0 0.0
        %466 = vmatprep.subr.mxu0 0.0
        %467 = vmatpush1.msra.mxu0 0.0
        %468 = vmatprep.mubr.f32.mxu0 0.0
        %469 = vmatmul.mubr.f32.gmra.mrb[0].mxu0 %v386
        %v470 = vpop.f32.mrb[0].mxu0
        %v471 = vadd.f32 0.0, %v470
        %v472 = vpop.f32.mrb[0].mxu0
        %v473 = vadd.f32 0.0, %v472
        %474 = vmatprep.mubr.f32.mxu0 0.0
        %475 = vmatmul.mubr.f32.gmra.mrb[0].mxu0 %v389
        %v476 = vpop.f32.mrb[0].mxu0
        %v477 = vadd.f32 0.0, %v476
        %v478 = vpop.f32.mrb[0].mxu0
        %v479 = vadd.f32 0.0, %v478
        %480 = vdwg.mxu0
        %481 = vmatprep.subr.mxu0 %v402
        %482 = vmatpush1.msra.mxu0 %v399
        %483 = vmatprep.subr.mxu0 0.0
        %484 = vmatpush1.msra.mxu0 0.0
        %485 = vmatprep.subr.mxu0 0.0
        %486 = vmatpush1.msra.mxu0 0.0
        %487 = vmatprep.subr.mxu0 0.0
        %488 = vmatpush1.msra.mxu0 0.0
        %489 = vmatprep.subr.mxu0 0.0
        %490 = vmatpush1.msra.mxu0 0.0
        %491 = vmatprep.subr.mxu0 0.0
        %492 = vmatpush1.msra.mxu0 0.0
        %493 = vmatprep.subr.mxu0 0.0
        %494 = vmatpush1.msra.mxu0 0.0
        %495 = vmatprep.subr.mxu0 0.0
        %496 = vmatpush1.msra.mxu0 0.0
        %497 = vmatprep.subr.mxu0 0.0
        %498 = vmatpush1.msra.mxu0 0.0
        %499 = vmatprep.subr.mxu0 0.0
        %500 = vmatpush1.msra.mxu0 0.0
        %501 = vmatprep.subr.mxu0 0.0
        %502 = vmatpush1.msra.mxu0 0.0
        %503 = vmatprep.subr.mxu0 0.0
        %504 = vmatpush1.msra.mxu0 0.0
        %505 = vmatprep.subr.mxu0 0.0
        %506 = vmatpush1.msra.mxu0 0.0
        %507 = vmatprep.subr.mxu0 0.0
        %508 = vmatpush1.msra.mxu0 0.0
        %509 = vmatprep.subr.mxu0 0.0
        %510 = vmatpush1.msra.mxu0 0.0
        %511 = vmatprep.subr.mxu0 0.0
        %512 = vmatpush1.msra.mxu0 0.0
        %513 = vmatprep.subr.mxu0 0.0
        %514 = vmatpush1.msra.mxu0 0.0
        %515 = vmatprep.subr.mxu0 0.0
        %516 = vmatpush1.msra.mxu0 0.0
        %517 = vmatprep.subr.mxu0 0.0
        %518 = vmatpush1.msra.mxu0 0.0
        %519 = vmatprep.subr.mxu0 0.0
        %520 = vmatpush1.msra.mxu0 0.0
        %521 = vmatprep.subr.mxu0 0.0
        %522 = vmatpush1.msra.mxu0 0.0
        %523 = vmatprep.subr.mxu0 0.0
        %524 = vmatpush1.msra.mxu0 0.0
        %525 = vmatprep.subr.mxu0 0.0
        %526 = vmatpush1.msra.mxu0 0.0
        %527 = vmatprep.subr.mxu0 0.0
        %528 = vmatpush1.msra.mxu0 0.0
        %529 = vmatprep.subr.mxu0 0.0
        %530 = vmatpush1.msra.mxu0 0.0
        %531 = vmatprep.subr.mxu0 0.0
        %532 = vmatpush1.msra.mxu0 0.0
        %533 = vmatprep.subr.mxu0 0.0
        %534 = vmatpush1.msra.mxu0 0.0
        %535 = vmatprep.subr.mxu0 0.0
        %536 = vmatpush1.msra.mxu0 0.0
        %537 = vmatprep.subr.mxu0 0.0
        %538 = vmatpush1.msra.mxu0 0.0
        %539 = vmatprep.subr.mxu0 0.0
        %540 = vmatpush1.msra.mxu0 0.0
        %541 = vmatprep.subr.mxu0 0.0
        %542 = vmatpush1.msra.mxu0 0.0
        %543 = vmatprep.subr.mxu0 0.0
        %544 = vmatpush1.msra.mxu0 0.0
        %545 = vmatprep.mubr.f32.mxu0 0.0
        %546 = vmatmul.mubr.f32.gmra.mrb[0].mxu0 %v386
        %v547 = vpop.f32.mrb[0].mxu0
        %v548 = vadd.f32 0.0, %v547
        %v549 = vpop.f32.mrb[0].mxu0
        %v550 = vadd.f32 0.0, %v549
        %551 = vmatprep.mubr.f32.mxu0 0.0
        %552 = vmatmul.mubr.f32.gmra.mrb[0].mxu0 %v389
        %v553 = vpop.f32.mrb[0].mxu0
        %v554 = vadd.f32 0.0, %v553
        %v555 = vpop.f32.mrb[0].mxu0
        %v556 = vadd.f32 0.0, %v555
        %557 = vdwg.mxu0
        %v558 = vld [vmem:[%s335] ss:$2 sm:$0xf]
        %s559 = scalar_lea.vmem %s335, 1
        %v560 = vld [vmem:[%s559] ss:$2 sm:$0xf]
        %s561 = sld [smem:[#allocation2]]
        %v562 = vstv %s561
        %v563 = vmul.f32 %v562, %v558
        %s564 = sld [smem:[#allocation2 + $0x1]]
        %v565 = vstv %s564
        %v566 = vmul.f32 %v565, %v560
        %v567 = vadd.f32 %v563, %v566
        %s568 = sld [smem:[#allocation2 + $0x2]]
        %v569 = vstv %s568
        %v570 = vadd.f32 %v567, %v569
        %s571 = sld [smem:[#allocation2 + $0x3]]
        %v572 = vstv %s571
        %v573 = vmul.f32 %v572, %v558
        %s574 = sld [smem:[#allocation2 + $0x4]]
        %v575 = vstv %s574
        %v576 = vmul.f32 %v575, %v560
        %v577 = vadd.f32 %v573, %v576
        %s578 = sld [smem:[#allocation2 + $0x5]]
        %v579 = vstv %s578
        %v580 = vadd.f32 %v577, %v579
        %v581 = vadd.f32 %v570, 1.0
        %v583 = vlaneseq
        %v584 = vshrl.u32 %v583, 7
        %v585 = vsub.s32 0, %v584
        %v586 = vrot.slane %v581, %v585
        %v587 = vlaneseq
        %v588 = vshrl.u32 %v587, 7
        %v589 = vsub.s32 1, %v588
        %v590 = vrot.slane %v581, %v589
        %v591 = vlaneseq
        %v592 = vshrl.u32 %v591, 7
        %v593 = vsub.s32 2, %v592
        %v594 = vrot.slane %v581, %v593
        %v595 = vlaneseq
        %v596 = vshrl.u32 %v595, 7
        %v597 = vsub.s32 3, %v596
        %v598 = vrot.slane %v581, %v597
        %v603 = vmul.f32 %v471, %v586
        %v604 = vmul.f32 %v473, %v590
        %v605 = vmul.f32 %v548, %v594
        %v606 = vmul.f32 %v550, %v598
        %v607 = vadd.f32 %v580, 1.0
        %v609 = vlaneseq
        %v610 = vshrl.u32 %v609, 7
        %v611 = vsub.s32 0, %v610
        %v612 = vrot.slane %v607, %v611
        %v613 = vlaneseq
        %v614 = vshrl.u32 %v613, 7
        %v615 = vsub.s32 1, %v614
        %v616 = vrot.slane %v607, %v615
        %v617 = vlaneseq
        %v618 = vshrl.u32 %v617, 7
        %v619 = vsub.s32 2, %v618
        %v620 = vrot.slane %v607, %v619
        %v621 = vlaneseq
        %v622 = vshrl.u32 %v621, 7
        %v623 = vsub.s32 3, %v622
        %v624 = vrot.slane %v607, %v623
        %v629 = vmul.f32 %v477, %v612
        %v630 = vmul.f32 %v479, %v616
        %v631 = vmul.f32 %v554, %v620
        %v632 = vmul.f32 %v556, %v624
        %v633 = vmul.f32 %v347, %v603
        %v634 = vmul.f32 %v348, %v604
        %v635 = vmul.f32 %v349, %v605
        %v636 = vmul.f32 %v350, %v606
        %v637 = vadd.f32 %v633, %v629
        %v638 = vadd.f32 %v634, %v630
        %v639 = vadd.f32 %v635, %v631
        %v640 = vadd.f32 %v636, %v632
        %641 = vst [vmem:[%s345] sm:$0xff] %v637
        %642 = vst [vmem:[%s345 + $0x8] sm:$0xff] %v638
        %643 = vst [vmem:[%s345 + $0x10] sm:$0xff] %v639
        %644 = vst [vmem:[%s345 + $0x18] sm:$0xff] %v640
        %s645 = smul.u32 4, %s22
        %p646 = scmp.lt.s32.totalorder %s21, 1
        %s647 = scalar_select %p646, %s21, 1
        %p648 = scmp.lt.s32.totalorder %s645, 7
        %s649 = scalar_select %p648, %s645, 7
        %s650 = smul.addr %s647, 8
        %s651 = sadd.s32 %s649, %s650
        %s652 = smul.addr %s651, 8
        %s653 = scalar_lea.vmem %s5, %s652
        // Predicated region
        $region45: #{class_affine.1} parent=39 // pred_check
          %p654 = pneg %p175
        $region46: #{class_affine.1} parent=39 // pred_check_branch
          %656 = sbr.rel (%p654) target = $region48
        $region47: #{class_affine.1} parent=39 // pred_region
          %s657 = smul.u32 4, %s22
        $region48: #{class_affine.1} parent=39 // pred_fallthru
          _
      $region40: #{class_affine.1} parent=5 // pred_fallthru
        _
      %p658 = scmp.le.s32.totalorder 2, %s12
      // Predicated region
      $region49: #{class_affine.1} parent=5 // pred_check
        %p659 = pneg %p658
      $region50: #{class_affine.1} parent=5 // pred_check_branch
        %661 = sbr.rel (%p659) target = $region52
      $region51: #{class_affine.1} parent=5 // pred_region
        %s662 = ssub.s32 %s12, 2
        // Predicated region
        $region53: #{class_affine.1} parent=51 // pred_check
          %p663 = pneg %p181
        $region54: #{class_affine.1} parent=51 // pred_check_branch
          %665 = sbr.rel (%p663) target = $region56
        $region55: #{class_affine.1} parent=51 // pred_region
          %s666 = smul.u32 4, %s24
          %p667 = scmp.lt.s32.totalorder %s23, 1
          %s668 = scalar_select %p667, %s23, 1
          %p669 = scmp.lt.s32.totalorder %s666, 7
          %s670 = scalar_select %p669, %s666, 7
          %s671 = smul.addr %s668, 8
          %s672 = sadd.s32 %s670, %s671
          %s673 = smul.addr %s672, 8
          %s674 = scalar_lea.vmem %s5, %s673
        $region56: #{class_affine.1} parent=51 // pred_fallthru
          _
      $region52: #{class_affine.1} parent=5 // pred_fallthru
        _
    $region6: #{class_affine.1} parent=1 // loop_footer
      %s16 = sadd.s32 1, %s12
    $region7: #{class_affine.1} parent=1 // loop_footer_branch
      %11 = sbr.rel target = $region3
    $region8: #{class_affine.1} parent=1 // loop_exit
      _
    %675 = vsyncpa [#allocation3], 1
    %s676 = scalar_lea.sflag [#allocation3], 1
    %677 = vsyncpa %s676, 1

</llo_original>
